<compile_context>
chip_gen: v5e
topology: v5e:2x2
jax: 0.10.0
libtpu: 0.0.40
codegen_flags: <defaults>
</compile_context>

<pallas_src>
import functools

import jax
import jax.numpy as jnp
from jax.experimental import pallas as pl
from jax.experimental.pallas import tpu as pltpu

LANE = 128
SUBLANE = 8


def _round_up(n, m):
    return ((n + m - 1) // m) * m


def _device_kind():
    try:
        return jax.devices()[0].device_kind.lower()
    except Exception:
        return ""


def _supports_bf16_elementwise():
    # bf16 VPU/EUP exist from v6e onward; v5e and earlier lack a bf16 tanh path.
    kind = _device_kind()
    if not kind:
        return False
    return not any(t in kind for t in ("v2", "v3", "v4", "v5"))


def _default_min_tiles():
    # v7x has 2 TensorCores per chip; give the "parallel" batch axis >= 2 tiles
    # when the batch allows. v5e/v6e have 1 TC -> extra grid steps are overhead.
    kind = _device_kind()
    return 2 if "7" in kind else 1


def mlp_kernel(x_ref, w1_ref, b1_ref, w2_ref, b2_ref, w3_ref, b3_ref, o_ref,
               *, act_dtype):
    # layer1: (BN folded into W1/b1) Linear -> Dropout(identity in eval) -> tanh
    h = jnp.dot(x_ref[...], w1_ref[...],
                preferred_element_type=jnp.float32) + b1_ref[...]
    h = jnp.tanh(h.astype(act_dtype))
    # layer2: Linear -> Dropout(identity) -> tanh
    h = jnp.dot(h.astype(w2_ref.dtype), w2_ref[...],
                preferred_element_type=jnp.float32) + b2_ref[...]
    h = jnp.tanh(h.astype(act_dtype))
    # layer3: Linear (no activation)
    h = jnp.dot(h.astype(w3_ref.dtype), w3_ref[...],
                preferred_element_type=jnp.float32) + b3_ref[...]
    o_ref[...] = h.astype(o_ref.dtype)


def fold_and_pad_params(raw_params, eps=1e-5, matmul_dtype=jnp.bfloat16):
    """Fold eval-mode BatchNorm1d into the following Linear and zero-pad.

    raw_params: 3 layers of (gamma, beta, running_mean, running_var, W(in,out), b(out,)).
    Layer 0's contraction dim is padded only to a multiple of 8 (x is streamed
    without 128-lane padding); later layers consume the lane-padded (128) hidden
    width. Output dims always padded to 128 -> lane-dense MXU tiles & stores.
    Returns (w1, b1, w2, b2, w3, b3): W in matmul_dtype, b as f32 (1, dout_pad).
    """
    prepared = []
    for li, (gamma, beta, mean, var, w, b) in enumerate(raw_params):
        scale = gamma / jnp.sqrt(var + eps)
        shift = beta - mean * scale
        w_fold = scale[:, None] * w          # (in, out)
        b_fold = b + shift @ w               # (out,)
        din, dout = w.shape
        din_p = _round_up(din, SUBLANE) if li == 0 else _round_up(din, LANE)
        dout_p = _round_up(dout, LANE)
        w_pad = jnp.zeros((din_p, dout_p), jnp.float32).at[:din, :dout].set(w_fold)
        b_pad = jnp.zeros((1, dout_p), jnp.float32).at[0, :dout].set(b_fold)
        prepared.append(w_pad.astype(matmul_dtype))
        prepared.append(b_pad)
    return tuple(prepared)


def linear_model_forward(x, prepared_params, out_dim, *, max_tile_b=1024,
                         min_tiles=None, out_dtype=None, bf16_elementwise=None):
    w1, b1, w2, b2, w3, b3 = prepared_params
    B, in_dim = x.shape
    in_p = w1.shape[0]
    h1_p, h2_p, dout_p = w1.shape[1], w2.shape[1], w3.shape[1]

    if out_dtype is None:
        out_dtype = x.dtype            # pass jnp.bfloat16 to halve writeback
    if bf16_elementwise is None:
        bf16_elementwise = _supports_bf16_elementwise()
    if min_tiles is None:
        min_tiles = _default_min_tiles()
    act_dtype = jnp.bfloat16 if bf16_elementwise else jnp.float32

    # --- batch tiling: round B to sublane (8), split into the fewest tiles
    # <= max_tile_b (worst-case padding is < one sublane per tile, no 2x balloon).
    b8 = _round_up(B, SUBLANE)
    n_tiles = max(min_tiles, pl.cdiv(b8, max_tile_b))
    n_tiles = min(n_tiles, b8 // SUBLANE)          # never create all-padding tiles
    tile_b = _round_up(pl.cdiv(b8, n_tiles), SUBLANE)
    b_pad = tile_b * n_tiles

    # Stream x as bf16, feature dim padded only to a multiple of 8 (no 128-lane
    # zero padding of the contraction dim in HBM).
    x_p = jnp.zeros((b_pad, in_p), jnp.bfloat16).at[:B, :in_dim].set(
        x.astype(jnp.bfloat16))

    grid = (n_tiles,)

    def resident(shape):
        # Constant index_map -> block stays resident in VMEM across batch tiles.
        # Single buffer: no point double-buffering a block that never changes.
        return pl.BlockSpec(shape, lambda i: (0, 0), pipeline_mode=pl.Buffered(1))

    flops = 2 * b_pad * (in_p * h1_p + h1_p * h2_p + h2_p * dout_p)
    bytes_accessed = int(
        x_p.size * x_p.dtype.itemsize
        + sum(a.size * a.dtype.itemsize for a in prepared_params)
        + b_pad * dout_p * jnp.dtype(out_dtype).itemsize)

    kernel = functools.partial(mlp_kernel, act_dtype=act_dtype)

    out_full = pl.pallas_call(
        kernel,
        out_shape=jax.ShapeDtypeStruct((b_pad, dout_p), out_dtype),
        grid=grid,
        in_specs=[
            pl.BlockSpec((tile_b, in_p), lambda i: (i, 0)),
            resident(w1.shape), resident(b1.shape),
            resident(w2.shape), resident(b2.shape),
            resident(w3.shape), resident(b3.shape),
        ],
        out_specs=pl.BlockSpec((tile_b, dout_p), lambda i: (i, 0)),
        compiler_params=pltpu.CompilerParams(
            dimension_semantics=("parallel",)),
        cost_estimate=pl.CostEstimate(
            flops=flops,
            transcendentals=b_pad * (h1_p + h2_p),
            bytes_accessed=bytes_accessed),
    )(x_p, w1, b1, w2, b2, w3, b3)

    return out_full[:B, :out_dim]


def make_raw_params(key, dims):
    """dims = (in_dim, h1, h2, out_dim). Returns 3 layers of
    (gamma, beta, running_mean, running_var, W(in,out), b(out,))."""
    layers = []
    for i in range(3):
        din, dout = dims[i], dims[i + 1]
        key, kg, kb, km, kv, kw, kbias = jax.random.split(key, 7)
        gamma = 1.0 + 0.1 * jax.random.normal(kg, (din,), jnp.float32)
        beta = 0.1 * jax.random.normal(kb, (din,), jnp.float32)
        mean = 0.05 * jax.random.normal(km, (din,), jnp.float32)
        var = 1.0 + 0.1 * jax.random.uniform(kv, (din,), jnp.float32)
        bound = 1.0 / (din ** 0.5)
        w = jax.random.uniform(kw, (din, dout), jnp.float32, -bound, bound)
        b = jax.random.uniform(kbias, (dout,), jnp.float32, -bound, bound)
        layers.append((gamma, beta, mean, var, w, b))
    return tuple(layers)


def reference_forward(x, raw_params, eps=1e-5):
    h = x
    for li, (gamma, beta, mean, var, w, b) in enumerate(raw_params):
        h = (h - mean) / jnp.sqrt(var + eps) * gamma + beta   # BatchNorm1d (eval)
        h = h @ w + b                                         # Linear (Dropout = id)
        if li < 2:
            h = jnp.tanh(h)
    return h


if __name__ == "__main__":
    batch, in_dim, h1, h2, out_dim = 8, 32, 64, 48, 16

    key = jax.random.PRNGKey(0)
    kx, kp = jax.random.split(key)
    x = jax.random.normal(kx, (batch, in_dim), jnp.float32)

    raw_params = make_raw_params(kp, (in_dim, h1, h2, out_dim))
    prepared = fold_and_pad_params(raw_params)

    out = linear_model_forward(x, prepared, out_dim)
    out = jax.block_until_ready(out)

    ref = reference_forward(x, raw_params)
    assert out.shape == (batch, out_dim)
    # bf16 x / bf16 weights (and bf16 tanh on v6e/v7x) vs. pure-f32 reference.
    assert jnp.allclose(out, ref, atol=1e-1, rtol=5e-2), "mismatch vs reference"

    print("KERNEL_OK")
</pallas_src>

<mosaic_0001>
module attributes {stable_mosaic.version = 11 : i64} {
  func.func @mlp_kernel(%arg0: i32, %arg1: memref<8x32xbf16, #tpu.memory_space<vmem>>, %arg2: memref<32x128xbf16, #tpu.memory_space<vmem>>, %arg3: memref<1x128xf32, #tpu.memory_space<vmem>>, %arg4: memref<128x128xbf16, #tpu.memory_space<vmem>>, %arg5: memref<1x128xf32, #tpu.memory_space<vmem>>, %arg6: memref<128x128xbf16, #tpu.memory_space<vmem>>, %arg7: memref<1x128xf32, #tpu.memory_space<vmem>>, %arg8: memref<8x128xf32, #tpu.memory_space<vmem>>) attributes {dimension_semantics = [#tpu.dimension_semantics<parallel>], iteration_bounds = array<i64: 1>, scalar_prefetch = 0 : i64, scratch_operands = 0 : i64, tpu.core_type = #tpu.core_type<tc>, window_params = [{transform_indices = @transform_0, window_bounds = array<i64: 8, 32>}, {pipeline_mode = #tpu.pipeline_mode<synchronous>, transform_indices = @transform_1, window_bounds = array<i64: 32, 128>}, {pipeline_mode = #tpu.pipeline_mode<synchronous>, transform_indices = @transform_2, window_bounds = array<i64: 1, 128>}, {pipeline_mode = #tpu.pipeline_mode<synchronous>, transform_indices = @transform_3, window_bounds = array<i64: 128, 128>}, {pipeline_mode = #tpu.pipeline_mode<synchronous>, transform_indices = @transform_4, window_bounds = array<i64: 1, 128>}, {pipeline_mode = #tpu.pipeline_mode<synchronous>, transform_indices = @transform_5, window_bounds = array<i64: 128, 128>}, {pipeline_mode = #tpu.pipeline_mode<synchronous>, transform_indices = @transform_6, window_bounds = array<i64: 1, 128>}, {transform_indices = @transform_7, window_bounds = array<i64: 8, 128>}]} {
    %c0 = arith.constant 0 : index
    %c0_0 = arith.constant 0 : index
    %0 = vector.load %arg1[%c0, %c0_0] : memref<8x32xbf16, #tpu.memory_space<vmem>>, vector<8x32xbf16>
    %c0_1 = arith.constant 0 : index
    %c0_2 = arith.constant 0 : index
    %1 = vector.load %arg2[%c0_1, %c0_2] : memref<32x128xbf16, #tpu.memory_space<vmem>>, vector<32x128xbf16>
    %cst = arith.constant dense<0.000000e+00> : vector<8x128xf32>
    %2 = tpu.matmul %0, %1, %cst {dimension_numbers = #tpu.dot_dimension_numbers<[1], [0], [0], [1], [0, 0, 1, 1], [], []>} : vector<8x32xbf16>, vector<32x128xbf16>, vector<8x128xf32> -> vector<8x128xf32>
    %c0_3 = arith.constant 0 : index
    %c0_4 = arith.constant 0 : index
    %3 = vector.load %arg3[%c0_3, %c0_4] : memref<1x128xf32, #tpu.memory_space<vmem>>, vector<1x128xf32>
    %4 = vector.broadcast %3 : vector<1x128xf32> to vector<8x128xf32>
    %5 = arith.addf %2, %4 : vector<8x128xf32>
    %6 = arith.truncf %5 : vector<8x128xf32> to vector<8x128xbf16>
    %7 = math.tanh %6 : vector<8x128xbf16>
    %c0_5 = arith.constant 0 : index
    %c0_6 = arith.constant 0 : index
    %8 = vector.load %arg4[%c0_5, %c0_6] : memref<128x128xbf16, #tpu.memory_space<vmem>>, vector<128x128xbf16>
    %cst_7 = arith.constant dense<0.000000e+00> : vector<8x128xf32>
    %9 = tpu.matmul %7, %8, %cst_7 {dimension_numbers = #tpu.dot_dimension_numbers<[1], [0], [0], [1], [0, 0, 1, 1], [], []>} : vector<8x128xbf16>, vector<128x128xbf16>, vector<8x128xf32> -> vector<8x128xf32>
    %c0_8 = arith.constant 0 : index
    %c0_9 = arith.constant 0 : index
    %10 = vector.load %arg5[%c0_8, %c0_9] : memref<1x128xf32, #tpu.memory_space<vmem>>, vector<1x128xf32>
    %11 = vector.broadcast %10 : vector<1x128xf32> to vector<8x128xf32>
    %12 = arith.addf %9, %11 : vector<8x128xf32>
    %13 = arith.truncf %12 : vector<8x128xf32> to vector<8x128xbf16>
    %14 = math.tanh %13 : vector<8x128xbf16>
    %c0_10 = arith.constant 0 : index
    %c0_11 = arith.constant 0 : index
    %15 = vector.load %arg6[%c0_10, %c0_11] : memref<128x128xbf16, #tpu.memory_space<vmem>>, vector<128x128xbf16>
    %cst_12 = arith.constant dense<0.000000e+00> : vector<8x128xf32>
    %16 = tpu.matmul %14, %15, %cst_12 {dimension_numbers = #tpu.dot_dimension_numbers<[1], [0], [0], [1], [0, 0, 1, 1], [], []>} : vector<8x128xbf16>, vector<128x128xbf16>, vector<8x128xf32> -> vector<8x128xf32>
    %c0_13 = arith.constant 0 : index
    %c0_14 = arith.constant 0 : index
    %17 = vector.load %arg7[%c0_13, %c0_14] : memref<1x128xf32, #tpu.memory_space<vmem>>, vector<1x128xf32>
    %18 = vector.broadcast %17 : vector<1x128xf32> to vector<8x128xf32>
    %19 = arith.addf %16, %18 : vector<8x128xf32>
    %c0_15 = arith.constant 0 : index
    %c0_16 = arith.constant 0 : index
    %20 = vector.load %arg8[%c0_15, %c0_16] : memref<8x128xf32, #tpu.memory_space<vmem>>, vector<8x128xf32>
    tpu.vector_store %arg8[%c0_15, %c0_16], %19 {strides = array<i32>} : memref<8x128xf32, #tpu.memory_space<vmem>>, vector<8x128xf32>,
    return
  }
  func.func @transform_0(%arg0: i32) -> (i32, i32) {
    %c0_i32 = arith.constant 0 : i32
    %c0_i32_0 = arith.constant 0 : i32
    return %arg0, %c0_i32 : i32, i32
  }
  func.func @transform_1(%arg0: i32) -> (i32, i32) {
    %c0_i32 = arith.constant 0 : i32
    %c0_i32_0 = arith.constant 0 : i32
    %c0_i32_1 = arith.constant 0 : i32
    return %c0_i32, %c0_i32_0 : i32, i32
  }
  func.func @transform_2(%arg0: i32) -> (i32, i32) {
    %c0_i32 = arith.constant 0 : i32
    %c0_i32_0 = arith.constant 0 : i32
    %c0_i32_1 = arith.constant 0 : i32
    return %c0_i32, %c0_i32_0 : i32, i32
  }
  func.func @transform_3(%arg0: i32) -> (i32, i32) {
    %c0_i32 = arith.constant 0 : i32
    %c0_i32_0 = arith.constant 0 : i32
    %c0_i32_1 = arith.constant 0 : i32
    return %c0_i32, %c0_i32_0 : i32, i32
  }
  func.func @transform_4(%arg0: i32) -> (i32, i32) {
    %c0_i32 = arith.constant 0 : i32
    %c0_i32_0 = arith.constant 0 : i32
    %c0_i32_1 = arith.constant 0 : i32
    return %c0_i32, %c0_i32_0 : i32, i32
  }
  func.func @transform_5(%arg0: i32) -> (i32, i32) {
    %c0_i32 = arith.constant 0 : i32
    %c0_i32_0 = arith.constant 0 : i32
    %c0_i32_1 = arith.constant 0 : i32
    return %c0_i32, %c0_i32_0 : i32, i32
  }
  func.func @transform_6(%arg0: i32) -> (i32, i32) {
    %c0_i32 = arith.constant 0 : i32
    %c0_i32_0 = arith.constant 0 : i32
    %c0_i32_1 = arith.constant 0 : i32
    return %c0_i32, %c0_i32_0 : i32, i32
  }
  func.func @transform_7(%arg0: i32) -> (i32, i32) {
    %c0_i32 = arith.constant 0 : i32
    %c0_i32_0 = arith.constant 0 : i32
    return %arg0, %c0_i32 : i32, i32
  }
}

</mosaic_0001>

<llo_original>
// kernel: tpu_custom_call.1
$region0: #{tpu_custom_call.1}
  #allocation0 [shape = 'u32[]', space=smem, size = 0x4, offset = 0x4, fixed_abs, tag = 'smem constant byte address 0x4 - core index']
  #allocation1 [shape = 'u32[72,128]{1,0:T(1,128)}', space=vmem, size = 0x9000, scoped, tag = 'internal scratch']
  %s0 = inlined_call_operand.hbm [shape: bf16[8,32], index: 0, kind: input, shape index: {}]
  %s1 = inlined_call_operand.hbm [shape: bf16[32,128], index: 1, kind: input, shape index: {}]
  %s2 = inlined_call_operand.vmem [shape: f32[1,128], index: 2, kind: input, shape index: {}]
  %s3 = inlined_call_operand.hbm [shape: bf16[128,128], index: 3, kind: input, shape index: {}]
  %s4 = inlined_call_operand.vmem [shape: f32[1,128], index: 4, kind: input, shape index: {}]
  %s5 = inlined_call_operand.hbm [shape: bf16[128,128], index: 5, kind: input, shape index: {}]
  %s6 = inlined_call_operand.vmem [shape: f32[1,128], index: 6, kind: input, shape index: {}]
  %s7 = inlined_call_operand.hbm [shape: f32[8,128], index: 7, kind: output, shape index: {}]
  %s8 = sld [smem:[#allocation0]]
  $region54: #{tpu_custom_call.1} parent=0
    _
  %s10 = ssub.s32 1, %s8
  %s11 = scalar_select 0, %s10, %s8
  $region1: #{tpu_custom_call.1} parent=0
    #allocation2 [shape = 'u8[2048]{0}', space=vmem, size = 0x800, scoped, tag = 'input window, operand 0, single buffered']
    #allocation3 [shape = 's32[1]{0}', space=sflag, size = 0x4, scoped, tag = 'scoped memory for tpu_custom_call.1']
    #allocation4 [shape = 's32[1]{0}', space=sflag, size = 0x4, scoped, tag = 'scoped memory for tpu_custom_call.1']
    #allocation5 [shape = 'u8[8192]{0}', space=vmem, size = 0x2000, scoped, tag = 'input window, operand 1, single buffered']
    #allocation6 [shape = 's32[1]{0}', space=sflag, size = 0x4, scoped, tag = 'scoped memory for tpu_custom_call.1']
    #allocation7 [shape = 'u8[32768]{0}', space=vmem, size = 0x8000, scoped, tag = 'input window, operand 3, single buffered']
    #allocation8 [shape = 'u8[32768]{0}', space=vmem, size = 0x8000, scoped, tag = 'input window, operand 5, single buffered']
    #allocation9 [shape = 's32[1]{0}', space=sflag, size = 0x4, scoped, tag = 'scoped memory for tpu_custom_call.1']
    #allocation10 [shape = 'u8[4096]{0}', space=vmem, size = 0x1000, scoped, tag = 'output window, operand 0, single buffered']
    %12 = vsyncpa [#allocation3], 0
    %13 = vsyncpa [#allocation6], 0
    %14 = vsyncpa [#allocation9], 0
    %15 = vsyncpa [#allocation4], 0
    // Predicated region
    $region2: #{tpu_custom_call.1} parent=1 // pred_check
      _
    $region3: #{tpu_custom_call.1} parent=1 // pred_check_branch
      %17 = sbr.rel (0) target = $region5
    $region4: #{tpu_custom_call.1} parent=1 // pred_region
      %19 = vsyncadd [#allocation3], 0
      %s21 = sshll.u32 %s0, 4
      %s22 = int_to_ptr.hbm [resolvable:$true] %s21
      %s23 = sshll.u32 [#allocation2], 4
      %s24 = int_to_ptr.vmem [resolvable:$true] %s23
      %26 = dma.hbm_to_vmem [thread:$0]  %s22, 64, %s24, [#allocation3]
    $region5: #{tpu_custom_call.1} parent=1 // pred_fallthru
      _
    // Predicated region
    $region6: #{tpu_custom_call.1} parent=1 // pred_check
      _
    $region7: #{tpu_custom_call.1} parent=1 // pred_check_branch
      %28 = sbr.rel (0) target = $region9
    $region8: #{tpu_custom_call.1} parent=1 // pred_region
      %30 = vsyncadd [#allocation6], 0
      %s31 = sshll.u32 %s1, 4
      %s32 = int_to_ptr.hbm [resolvable:$true] %s31
      %s33 = sshll.u32 [#allocation5], 4
      %s34 = int_to_ptr.vmem [resolvable:$true] %s33
      %39 = dma.hbm_to_vmem [thread:$0]  %s32, 256, %s34, [#allocation6], 64, 64, 4
    $region9: #{tpu_custom_call.1} parent=1 // pred_fallthru
      _
    // Predicated region
    $region10: #{tpu_custom_call.1} parent=1 // pred_check
      _
    $region11: #{tpu_custom_call.1} parent=1 // pred_check_branch
      %41 = sbr.rel (0) target = $region13
    $region12: #{tpu_custom_call.1} parent=1 // pred_region
      _
    $region13: #{tpu_custom_call.1} parent=1 // pred_fallthru
      _
    // Predicated region
    $region14: #{tpu_custom_call.1} parent=1 // pred_check
      _
    $region15: #{tpu_custom_call.1} parent=1 // pred_check_branch
      %43 = sbr.rel (0) target = $region17
    $region16: #{tpu_custom_call.1} parent=1 // pred_region
      %45 = vsyncadd [#allocation6], 0
      %s46 = sshll.u32 %s3, 4
      %s47 = int_to_ptr.hbm [resolvable:$true] %s46
      %s48 = sshll.u32 [#allocation7], 4
      %s49 = int_to_ptr.vmem [resolvable:$true] %s48
      %54 = dma.hbm_to_vmem [thread:$0]  %s47, 1024, %s49, [#allocation6], 64, 64, 4
    $region17: #{tpu_custom_call.1} parent=1 // pred_fallthru
      _
    // Predicated region
    $region18: #{tpu_custom_call.1} parent=1 // pred_check
      _
    $region19: #{tpu_custom_call.1} parent=1 // pred_check_branch
      %56 = sbr.rel (0) target = $region21
    $region20: #{tpu_custom_call.1} parent=1 // pred_region
      _
    $region21: #{tpu_custom_call.1} parent=1 // pred_fallthru
      _
    // Predicated region
    $region22: #{tpu_custom_call.1} parent=1 // pred_check
      _
    $region23: #{tpu_custom_call.1} parent=1 // pred_check_branch
      %58 = sbr.rel (0) target = $region25
    $region24: #{tpu_custom_call.1} parent=1 // pred_region
      %60 = vsyncadd [#allocation9], 0
      %s61 = sshll.u32 %s5, 4
      %s62 = int_to_ptr.hbm [resolvable:$true] %s61
      %s63 = sshll.u32 [#allocation8], 4
      %s64 = int_to_ptr.vmem [resolvable:$true] %s63
      %69 = dma.hbm_to_vmem [thread:$0]  %s62, 1024, %s64, [#allocation9], 64, 64, 4
    $region25: #{tpu_custom_call.1} parent=1 // pred_fallthru
      _
    // Predicated region
    $region26: #{tpu_custom_call.1} parent=1 // pred_check
      _
    $region27: #{tpu_custom_call.1} parent=1 // pred_check_branch
      %71 = sbr.rel (0) target = $region29
    $region28: #{tpu_custom_call.1} parent=1 // pred_region
      _
    $region29: #{tpu_custom_call.1} parent=1 // pred_fallthru
      _
    // Predicated region
    $region30: #{tpu_custom_call.1} parent=1 // pred_check
      _
    $region31: #{tpu_custom_call.1} parent=1 // pred_check_branch
      %73 = sbr.rel (0) target = $region33
    $region32: #{tpu_custom_call.1} parent=1 // pred_region
      %75 = dma.done [#allocation3], 64
    $region33: #{tpu_custom_call.1} parent=1 // pred_fallthru
      _
    // Predicated region
    $region34: #{tpu_custom_call.1} parent=1 // pred_check
      _
    $region35: #{tpu_custom_call.1} parent=1 // pred_check_branch
      %77 = sbr.rel (0) target = $region37
    $region36: #{tpu_custom_call.1} parent=1 // pred_region
      %79 = dma.done [#allocation6], 256
    $region37: #{tpu_custom_call.1} parent=1 // pred_fallthru
      _
    // Predicated region
    $region38: #{tpu_custom_call.1} parent=1 // pred_check
      _
    $region39: #{tpu_custom_call.1} parent=1 // pred_check_branch
      %81 = sbr.rel (0) target = $region41
    $region40: #{tpu_custom_call.1} parent=1 // pred_region
      %83 = dma.done [#allocation6], 1024
    $region41: #{tpu_custom_call.1} parent=1 // pred_fallthru
      _
    // Predicated region
    $region42: #{tpu_custom_call.1} parent=1 // pred_check
      _
    $region43: #{tpu_custom_call.1} parent=1 // pred_check_branch
      %85 = sbr.rel (0) target = $region45
    $region44: #{tpu_custom_call.1} parent=1 // pred_region
      %87 = dma.done [#allocation9], 1024
    $region45: #{tpu_custom_call.1} parent=1 // pred_fallthru
      _
    %v89 = vld [vmem:[#allocation2] sm:$0xf]
    %v90 = vld [vmem:[#allocation5] sm:$0xf]
    %v91 = vld [vmem:[#allocation5 + $0x4] sm:$0xf]
    %v92 = vld [vmem:[#allocation5 + $0x8] sm:$0xf]
    %v93 = vld [vmem:[#allocation5 + $0xc] sm:$0xf]
    %v94 = vld [vmem:[%s2] sm:$0x1]
    %v96 = vperm.slane %v94, 0
    %v102 = vunpack.c.l.b16 %v90
    %v103 = vunpack.c.l.b16 %v91
    %v104 = vunpack.c.l.b16 %v92
    %v105 = vunpack.c.l.b16 %v93
    %v106 = vpack.c.b16 %v103, %v102
    %v107 = vpack.c.b16 %v105, %v104
    %vm110 = vcmask 261120
    %v112 = vsel %vm110, %v89, 0
    %114 = vmatpush.bf16.msra.mxu0 0
    %115 = vmatpush.bf16.msra.mxu0 0
    %116 = vmatpush.bf16.msra.mxu0 0
    %117 = vmatpush.bf16.msra.mxu0 0
    %118 = vmatpush.bf16.msra.mxu0 0
    %119 = vmatpush.bf16.msra.mxu0 0
    %120 = vmatpush.bf16.msra.mxu0 %v107
    %121 = vmatpush.bf16.msra.mxu0 %v106
    %122 = vmatmul.bf16.gmra.mxu0 %v112
    %v123 = vpop.f32.mrf.mxu0
    %v124 = vadd.f32 %v96, %v123
    %v125 = vpop.f32.mrf.mxu0
    %126 = vdwg.mxu0
    %v127 = vpack.c.bf16 %v124, %v124
    %v128 = vunpack.c.l.bf16 %v127
    %v129 = vtanh.pop %v128
    %v130 = vpack.c.bf16 %v129, %v129
    %v131 = vld [vmem:[#allocation7] sm:$0xf]
    %v132 = vld [vmem:[#allocation7 + $0x4] sm:$0xf]
    %v133 = vld [vmem:[#allocation7 + $0x8] sm:$0xf]
    %v134 = vld [vmem:[#allocation7 + $0xc] sm:$0xf]
    %v135 = vld [vmem:[#allocation7 + $0x10] sm:$0xf]
    %v136 = vld [vmem:[#allocation7 + $0x14] sm:$0xf]
    %v137 = vld [vmem:[#allocation7 + $0x18] sm:$0xf]
    %v138 = vld [vmem:[#allocation7 + $0x1c] sm:$0xf]
    %v139 = vld [vmem:[#allocation7 + $0x20] sm:$0xf]
    %v140 = vld [vmem:[#allocation7 + $0x24] sm:$0xf]
    %v141 = vld [vmem:[#allocation7 + $0x28] sm:$0xf]
    %v142 = vld [vmem:[#allocation7 + $0x2c] sm:$0xf]
    %v143 = vld [vmem:[#allocation7 + $0x30] sm:$0xf]
    %v144 = vld [vmem:[#allocation7 + $0x34] sm:$0xf]
    %v145 = vld [vmem:[#allocation7 + $0x38] sm:$0xf]
    %v146 = vld [vmem:[#allocation7 + $0x3c] sm:$0xf]
    %v147 = vld [vmem:[%s4] sm:$0x1]
    %v149 = vperm.slane %v147, 0
    %v167 = vunpack.c.l.b16 %v131
    %v168 = vunpack.c.l.b16 %v132
    %v169 = vunpack.c.l.b16 %v133
    %v170 = vunpack.c.l.b16 %v134
    %v171 = vunpack.c.l.b16 %v135
    %v172 = vunpack.c.l.b16 %v136
    %v173 = vunpack.c.l.b16 %v137
    %v174 = vunpack.c.l.b16 %v138
    %v175 = vunpack.c.l.b16 %v139
    %v176 = vunpack.c.l.b16 %v140
    %v177 = vunpack.c.l.b16 %v141
    %v178 = vunpack.c.l.b16 %v142
    %v179 = vunpack.c.l.b16 %v143
    %v180 = vunpack.c.l.b16 %v144
    %v181 = vunpack.c.l.b16 %v145
    %v182 = vunpack.c.l.b16 %v146
    %v183 = vpack.c.b16 %v168, %v167
    %v184 = vpack.c.b16 %v170, %v169
    %v185 = vpack.c.b16 %v172, %v171
    %v186 = vpack.c.b16 %v174, %v173
    %v187 = vpack.c.b16 %v176, %v175
    %v188 = vpack.c.b16 %v178, %v177
    %v189 = vpack.c.b16 %v180, %v179
    %v190 = vpack.c.b16 %v182, %v181
    %199 = vmatpush.bf16.msra.mxu0 %v190
    %200 = vmatpush.bf16.msra.mxu0 %v189
    %201 = vmatpush.bf16.msra.mxu0 %v188
    %202 = vmatpush.bf16.msra.mxu0 %v187
    %203 = vmatpush.bf16.msra.mxu0 %v186
    %204 = vmatpush.bf16.msra.mxu0 %v185
    %205 = vmatpush.bf16.msra.mxu0 %v184
    %206 = vmatpush.bf16.msra.mxu0 %v183
    %207 = vmatmul.bf16.gmra.mxu0 %v130
    %v208 = vpop.f32.mrf.mxu0
    %v209 = vadd.f32 %v149, %v208
    %v210 = vpop.f32.mrf.mxu0
    %211 = vdwg.mxu0
    %v212 = vpack.c.bf16 %v209, %v209
    %v213 = vunpack.c.l.bf16 %v212
    %v214 = vtanh.pop %v213
    %v215 = vpack.c.bf16 %v214, %v214
    %v216 = vld [vmem:[#allocation8] sm:$0xf]
    %v217 = vld [vmem:[#allocation8 + $0x4] sm:$0xf]
    %v218 = vld [vmem:[#allocation8 + $0x8] sm:$0xf]
    %v219 = vld [vmem:[#allocation8 + $0xc] sm:$0xf]
    %v220 = vld [vmem:[#allocation8 + $0x10] sm:$0xf]
    %v221 = vld [vmem:[#allocation8 + $0x14] sm:$0xf]
    %v222 = vld [vmem:[#allocation8 + $0x18] sm:$0xf]
    %v223 = vld [vmem:[#allocation8 + $0x1c] sm:$0xf]
    %v224 = vld [vmem:[#allocation8 + $0x20] sm:$0xf]
    %v225 = vld [vmem:[#allocation8 + $0x24] sm:$0xf]
    %v226 = vld [vmem:[#allocation8 + $0x28] sm:$0xf]
    %v227 = vld [vmem:[#allocation8 + $0x2c] sm:$0xf]
    %v228 = vld [vmem:[#allocation8 + $0x30] sm:$0xf]
    %v229 = vld [vmem:[#allocation8 + $0x34] sm:$0xf]
    %v230 = vld [vmem:[#allocation8 + $0x38] sm:$0xf]
    %v231 = vld [vmem:[#allocation8 + $0x3c] sm:$0xf]
    %v232 = vld [vmem:[%s6] sm:$0x1]
    %v234 = vperm.slane %v232, 0
    %v252 = vunpack.c.l.b16 %v216
    %v253 = vunpack.c.l.b16 %v217
    %v254 = vunpack.c.l.b16 %v218
    %v255 = vunpack.c.l.b16 %v219
    %v256 = vunpack.c.l.b16 %v220
    %v257 = vunpack.c.l.b16 %v221
    %v258 = vunpack.c.l.b16 %v222
    %v259 = vunpack.c.l.b16 %v223
    %v260 = vunpack.c.l.b16 %v224
    %v261 = vunpack.c.l.b16 %v225
    %v262 = vunpack.c.l.b16 %v226
    %v263 = vunpack.c.l.b16 %v227
    %v264 = vunpack.c.l.b16 %v228
    %v265 = vunpack.c.l.b16 %v229
    %v266 = vunpack.c.l.b16 %v230
    %v267 = vunpack.c.l.b16 %v231
    %v268 = vpack.c.b16 %v253, %v252
    %v269 = vpack.c.b16 %v255, %v254
    %v270 = vpack.c.b16 %v257, %v256
    %v271 = vpack.c.b16 %v259, %v258
    %v272 = vpack.c.b16 %v261, %v260
    %v273 = vpack.c.b16 %v263, %v262
    %v274 = vpack.c.b16 %v265, %v264
    %v275 = vpack.c.b16 %v267, %v266
    %284 = vmatpush.bf16.msra.mxu0 %v275
    %285 = vmatpush.bf16.msra.mxu0 %v274
    %286 = vmatpush.bf16.msra.mxu0 %v273
    %287 = vmatpush.bf16.msra.mxu0 %v272
    %288 = vmatpush.bf16.msra.mxu0 %v271
    %289 = vmatpush.bf16.msra.mxu0 %v270
    %290 = vmatpush.bf16.msra.mxu0 %v269
    %291 = vmatpush.bf16.msra.mxu0 %v268
    %292 = vmatmul.bf16.gmra.mxu0 %v215
    %v293 = vpop.f32.mrf.mxu0
    %v294 = vadd.f32 %v234, %v293
    %v295 = vpop.f32.mrf.mxu0
    %296 = vdwg.mxu0
    %297 = vst [vmem:[#allocation10] sm:$0xff] %v294
    // Predicated region
    $region46: #{tpu_custom_call.1} parent=1 // pred_check
      _
    $region47: #{tpu_custom_call.1} parent=1 // pred_check_branch
      %299 = sbr.rel (0) target = $region49
    $region48: #{tpu_custom_call.1} parent=1 // pred_region
      %301 = vsyncadd [#allocation4], 0
      %s303 = sshll.u32 [#allocation10], 4
      %s304 = int_to_ptr.vmem [resolvable:$true] %s303
      %s305 = sshll.u32 %s7, 4
      %s306 = int_to_ptr.hbm [resolvable:$true] %s305
      %308 = dma.vmem_to_hbm [thread:$0]  %s304, 128, %s306, [#allocation4]
    $region49: #{tpu_custom_call.1} parent=1 // pred_fallthru
      _
    // Predicated region
    $region50: #{tpu_custom_call.1} parent=1 // pred_check
      _
    $region51: #{tpu_custom_call.1} parent=1 // pred_check_branch
      %310 = sbr.rel (0) target = $region53
    $region52: #{tpu_custom_call.1} parent=1 // pred_region
      %312 = dma.done [#allocation4], 128
    $region53: #{tpu_custom_call.1} parent=1 // pred_fallthru
      _
    %313 = vsyncpa [#allocation3], 1
    %314 = vsyncpa [#allocation6], 1
    %315 = vsyncpa [#allocation9], 1
    %316 = vsyncpa [#allocation4], 1

</llo_original>
